<compile_context>
chip_gen: v6e
topology: v6e:2x2x1
jax: 0.10.0
libtpu: 0.0.40
codegen_flags: <defaults>
</compile_context>

<pallas_src>
import functools

import jax
import jax.numpy as jnp
from jax import lax
from jax.experimental import pallas as pl
from jax.experimental.pallas import tpu as pltpu


def _fused_conv_bn_relu_kernel(
    x_ref,       # (1, C1, HW)    f32   one image, row-major flattened spatial
    w_ref,       # (C2p, k*k*C1)  bf16  conv weights, columns ordered (kh, kw, c1)
    g_ref,       # (C2p, 1)       f32   BN gamma
    b_ref,       # (C2p, 1)       f32   BN beta
    mask_ref,    # (1, HW)        f32   1.0 at valid output positions, else 0.0
    o_ref,       # (1, C2p, HW)   f32   output block (invalid positions = garbage, sliced off)
    xs_ref,      # scratch (C1, HWs)      bf16  staged image (zero tail for window wrap)
    slab_ref,    # scratch (k*k*C1, HW)   bf16  shifted-tap slab (matmul RHS)
    y_ref,       # scratch (N, C2p, HW)   bf16  VMEM-resident conv output
    mean_ref,    # scratch (C2p, 1) f32   running per-channel mean (Chan merge)
    m2_ref,      # scratch (C2p, 1) f32   running per-channel sum of squared deviations
    scale_ref,   # scratch (C2p, 1) f32   gamma * rsqrt(var + eps)
    shift_ref,   # scratch (C2p, 1) f32   beta - mean * scale
    *, k, W, inv_cnt_img, cnt_img, inv_count, eps,
):
    # Grid order assumption (correct for Pallas row-major grids): all p==0 steps
    # run before any p==1 step, with n fastest inside each phase.
    p = pl.program_id(0)          # phase: 0 = conv + stats, 1 = normalize + ReLU
    n = pl.program_id(1)          # image index

    C1 = x_ref.shape[1]
    HW = o_ref.shape[2]

    # ---------------- phase 0: conv (one big-K matmul) + per-image stats -------------
    @pl.when(p == 0)
    def _():
        @pl.when(n == 0)
        def _():
            xs_ref[...] = jnp.zeros_like(xs_ref)       # zero tail -> finite y everywhere
            mean_ref[...] = jnp.zeros_like(mean_ref)
            m2_ref[...] = jnp.zeros_like(m2_ref)
            o_ref[...] = jnp.zeros_like(o_ref)         # never flush uninitialized data

        # In-kernel bf16 cast + stage (tail stays zero).
        xs_ref[:, pl.ds(0, HW)] = x_ref[0].astype(jnp.bfloat16)

        # Build the (k*k*C1, HW) RHS slab: row block for tap (kh, kw) is x shifted
        # by kh*W + kw along the flattened spatial axis.
        for kh in range(k):
            for kw in range(k):
                tap = kh * k + kw
                slab_ref[pl.ds(tap * C1, C1), :] = xs_ref[:, pl.ds(kh * W + kw, HW)]

        # Single MXU matmul, K = k*k*C1, f32 accumulation.
        acc = jnp.dot(w_ref[...], slab_ref[...],
                      preferred_element_type=jnp.float32)          # (C2p, HW)
        y_ref[n] = acc.astype(jnp.bfloat16)

        # Per-image centered stats over valid positions (from the f32 accumulator),
        # merged into the global (mean, M2) with Chan's parallel-variance update.
        msk = mask_ref[...]                                        # (1, HW)
        s = jnp.sum(acc * msk, axis=1, keepdims=True)              # (C2p, 1)
        m_img = s * inv_cnt_img
        d = (acc - m_img) * msk
        ssd_img = jnp.sum(d * d, axis=1, keepdims=True)

        nf = n.astype(jnp.float32)                                 # images merged so far
        delta = m_img - mean_ref[...]
        mean_ref[...] = mean_ref[...] + delta / (nf + 1.0)
        m2_ref[...] = m2_ref[...] + ssd_img + (delta * delta) * (cnt_img * nf / (nf + 1.0))

    # ---------------- phase 1: finalize affine once, then BN + ReLU ------------------
    @pl.when(p == 1)
    def _():
        @pl.when(n == 0)
        def _():
            var = m2_ref[...] * inv_count                          # biased var (BN training)
            inv_std = lax.rsqrt(var + eps)
            scale_ref[...] = g_ref[...] * inv_std
            shift_ref[...] = b_ref[...] - mean_ref[...] * scale_ref[...]

        o_ref[0] = jnp.maximum(
            y_ref[n].astype(jnp.float32) * scale_ref[...] + shift_ref[...], 0.0)


def conv_module_forward(x, weight, gamma, beta, *, eps=1e-5):
    """x: (N, C1, H, W) f32 NCHW; weight: (C2, C1, k, k); gamma/beta: (C2,). Returns NCHW f32."""
    N, C1, H, W = x.shape
    C2, _, k, _ = weight.shape
    Ho, Wo = H - k + 1, W - k + 1            # VALID conv (PyTorch default: stride 1, padding 0)
    HW = H * W
    Kc = k * k * C1                          # contraction depth of the fused matmul
    cnt_img = Ho * Wo                        # valid positions per image
    M = N * cnt_img                          # BN count
    C2p = ((C2 + 7) // 8) * 8                # channels padded to a sublane multiple
    tail = (k - 1) * W + (k - 1)             # largest in-kernel window shift
    HWs = pl.cdiv(HW + tail, 128) * 128      # staged-x lane width (zero tail in-kernel)

    # ---- glue: only free reshapes / tiny constant prep (no pad/cast pass over x) ----
    xf = x.reshape(N, C1, HW)                                            # f32, cast in-kernel
    wt = jnp.transpose(weight, (0, 2, 3, 1)).reshape(C2, Kc)             # cols = (kh, kw, c1)
    wt = jnp.pad(wt, ((0, C2p - C2), (0, 0))).astype(jnp.bfloat16)
    g2 = jnp.pad(gamma.astype(jnp.float32), (0, C2p - C2)).reshape(C2p, 1)
    b2 = jnp.pad(beta.astype(jnp.float32), (0, C2p - C2)).reshape(C2p, 1)
    pos = jnp.arange(HW, dtype=jnp.int32)
    mask = (((pos % W) < Wo) & ((pos // W) < Ho)).astype(jnp.float32).reshape(1, HW)

    # Explicit VMEM budget: resident bf16 y + all double-buffered operands + scratch.
    needed = (
        N * C2p * HW * 2                  # resident y (bf16)
        + 2 * C1 * HW * 4                 # x blocks (f32, double buffered)
        + 2 * C2p * HW * 4                # output blocks (f32, double buffered)
        + 2 * C2p * Kc * 2                # weights (double buffered)
        + 2 * HW * 4 + 4 * C2p * 4        # mask + gamma/beta buffers
        + C1 * HWs * 2 + Kc * HW * 2      # x staging + tap slab
        + 8 * C2p * 128 * 4               # per-channel scratches + layout slack
    )
    try:
        cap = int(pltpu.get_tpu_info().vmem_capacity_bytes)   # 128 MiB v5e/v6e, 64 MiB v7x
    except Exception:
        cap = 128 * 1024 * 1024
    vmem_limit = max(32 * 1024 * 1024, min(int(0.9 * cap), needed + 8 * 1024 * 1024))

    kernel = functools.partial(
        _fused_conv_bn_relu_kernel,
        k=k, W=W, inv_cnt_img=1.0 / cnt_img, cnt_img=float(cnt_img),
        inv_count=1.0 / M, eps=float(eps))

    out_full = pl.pallas_call(
        kernel,
        out_shape=jax.ShapeDtypeStruct((N, C2p, HW), jnp.float32),
        grid_spec=pltpu.PrefetchScalarGridSpec(
            num_scalar_prefetch=0,
            grid=(2, N),                       # (phase, image); phases run in order
            in_specs=[
                # x is only consumed in phase 0; park on block 0 afterwards so the
                # pipeline does not re-stream it during phase 1.
                pl.BlockSpec((1, C1, HW),
                             lambda p, n: (jnp.where(p == 0, n, 0), 0, 0)),
                pl.BlockSpec((C2p, Kc), lambda p, n: (0, 0)),     # resident weights
                pl.BlockSpec((C2p, 1), lambda p, n: (0, 0)),      # gamma
                pl.BlockSpec((C2p, 1), lambda p, n: (0, 0)),      # beta
                pl.BlockSpec((1, HW), lambda p, n: (0, 0)),       # valid mask
            ],
            # Only phase 1 writes; the block stays parked at index 0 before that
            # (and is zero-initialized at the first step for extra safety).
            out_specs=pl.BlockSpec((1, C2p, HW),
                                   lambda p, n: (jnp.where(p == 1, n, 0), 0, 0)),
            scratch_shapes=[
                pltpu.VMEM((C1, HWs), jnp.bfloat16),      # staged image (zero tail)
                pltpu.VMEM((Kc, HW), jnp.bfloat16),       # shifted-tap slab (matmul RHS)
                pltpu.VMEM((N, C2p, HW), jnp.bfloat16),   # resident conv output y
                pltpu.VMEM((C2p, 1), jnp.float32),        # running mean
                pltpu.VMEM((C2p, 1), jnp.float32),        # running M2 (sum sq dev)
                pltpu.VMEM((C2p, 1), jnp.float32),        # scale
                pltpu.VMEM((C2p, 1), jnp.float32),        # shift
            ],
        ),
        compiler_params=pltpu.CompilerParams(
            dimension_semantics=("arbitrary", "arbitrary"),
            vmem_limit_bytes=int(vmem_limit),
        ),
    )(xf, wt, g2, b2, mask)

    # (N, C2p, H*W) -> NCHW; drop padded channels and the invalid wrap positions.
    return out_full.reshape(N, C2p, H, W)[:, :C2, :Ho, :Wo]


def reference_forward(x, weight, gamma, beta, eps=1e-5):
    """Pure-JAX reference for ConvModule.forward (training-mode BN).  Conv inputs are
    cast to bf16 like the kernel (f32 accumulation); the kernel additionally keeps the
    conv output resident in bf16, so the comparison tolerance is ~bf16 level."""
    y = lax.conv_general_dilated(
        x.astype(jnp.bfloat16), weight.astype(jnp.bfloat16),
        window_strides=(1, 1), padding="VALID",
        dimension_numbers=("NCHW", "OIHW", "NCHW"),
        preferred_element_type=jnp.float32)
    mean = y.mean(axis=(0, 2, 3), keepdims=True)
    var = ((y - mean) ** 2).mean(axis=(0, 2, 3), keepdims=True)   # biased var (BN training)
    yn = (y - mean) * lax.rsqrt(var + eps)
    yn = yn * gamma.reshape(1, -1, 1, 1) + beta.reshape(1, -1, 1, 1)
    return jnp.maximum(yn, 0.0)


if __name__ == "__main__":
    key = jax.random.PRNGKey(0)
    kx, kw_, kg, kb = jax.random.split(key, 4)

    N, C1, C2, H, W, k = 2, 4, 8, 16, 16, 3
    x = jax.random.normal(kx, (N, C1, H, W), dtype=jnp.float32)
    weight = 0.1 * jax.random.normal(kw_, (C2, C1, k, k), dtype=jnp.float32)   # Conv2d (bias=False)
    gamma = 1.0 + 0.5 * jax.random.normal(kg, (C2,), dtype=jnp.float32)        # BN weight
    beta = 0.1 * jax.random.normal(kb, (C2,), dtype=jnp.float32)               # BN bias

    out = jax.block_until_ready(conv_module_forward(x, weight, gamma, beta))
    assert out.shape == (N, C2, H - k + 1, W - k + 1), out.shape

    ref = reference_forward(x, weight, gamma, beta)
    max_err = float(jnp.max(jnp.abs(out - ref)))
    # Tolerance covers the bf16-resident conv output (stats are taken in f32).
    assert max_err < 3e-2, f"mismatch vs reference, max abs err = {max_err}"

    print("KERNEL_OK")
</pallas_src>

<mosaic_0001>
module attributes {stable_mosaic.version = 11 : i64} {
  func.func @_fused_conv_bn_relu_kernel(%arg0: i32, %arg1: i32, %arg2: memref<1x4x256xf32, #tpu.memory_space<vmem>>, %arg3: memref<8x36xbf16, #tpu.memory_space<vmem>>, %arg4: memref<8x1xf32, #tpu.memory_space<vmem>>, %arg5: memref<8x1xf32, #tpu.memory_space<vmem>>, %arg6: memref<1x256xf32, #tpu.memory_space<vmem>>, %arg7: memref<1x8x256xf32, #tpu.memory_space<vmem>>, %arg8: memref<4x384xbf16, #tpu.memory_space<vmem>>, %arg9: memref<36x256xbf16, #tpu.memory_space<vmem>>, %arg10: memref<2x8x256xbf16, #tpu.memory_space<vmem>>, %arg11: memref<8x1xf32, #tpu.memory_space<vmem>>, %arg12: memref<8x1xf32, #tpu.memory_space<vmem>>, %arg13: memref<8x1xf32, #tpu.memory_space<vmem>>, %arg14: memref<8x1xf32, #tpu.memory_space<vmem>>) attributes {dimension_semantics = [#tpu.dimension_semantics<arbitrary>, #tpu.dimension_semantics<arbitrary>], iteration_bounds = array<i64: 2, 2>, scalar_prefetch = 0 : i64, scratch_operands = 7 : i64, tpu.core_type = #tpu.core_type<tc>, window_params = [{transform_indices = @transform_0, window_bounds = array<i64: 1, 4, 256>}, {pipeline_mode = #tpu.pipeline_mode<synchronous>, transform_indices = @transform_1, window_bounds = array<i64: 8, 36>}, {pipeline_mode = #tpu.pipeline_mode<synchronous>, transform_indices = @transform_2, window_bounds = array<i64: 8, 1>}, {pipeline_mode = #tpu.pipeline_mode<synchronous>, transform_indices = @transform_3, window_bounds = array<i64: 8, 1>}, {pipeline_mode = #tpu.pipeline_mode<synchronous>, transform_indices = @transform_4, window_bounds = array<i64: 1, 256>}, {transform_indices = @transform_5, window_bounds = array<i64: 1, 8, 256>}]} {
    %c0_i32 = arith.constant 0 : i32
    %0 = arith.cmpi eq, %arg0, %c0_i32 : i32
    %1 = arith.extui %0 : i1 to i32
    %c0_i32_0 = arith.constant 0 : i32
    %2 = arith.cmpi ne, %1, %c0_i32_0 : i32
    scf.if %2 {
      %c0_i32_2 = arith.constant 0 : i32
      %6 = arith.cmpi eq, %arg1, %c0_i32_2 : i32
      %7 = arith.extui %6 : i1 to i32
      %c0_i32_3 = arith.constant 0 : i32
      %8 = arith.cmpi ne, %7, %c0_i32_3 : i32
      scf.if %8 {
        %cst_54 = arith.constant 0.000000e+00 : bf16
        %72 = vector.broadcast %cst_54 : bf16 to vector<4x384xbf16>
        %c0_55 = arith.constant 0 : index
        %c0_56 = arith.constant 0 : index
        %73 = vector.load %arg8[%c0_55, %c0_56] : memref<4x384xbf16, #tpu.memory_space<vmem>>, vector<4x384xbf16>
        tpu.vector_store %arg8[%c0_55, %c0_56], %72 {strides = array<i32>} : memref<4x384xbf16, #tpu.memory_space<vmem>>, vector<4x384xbf16>,
        %cst_57 = arith.constant 0.000000e+00 : f32
        %74 = vector.broadcast %cst_57 : f32 to vector<8x1xf32>
        %c0_58 = arith.constant 0 : index
        %c0_59 = arith.constant 0 : index
        %75 = vector.load %arg11[%c0_58, %c0_59] : memref<8x1xf32, #tpu.memory_space<vmem>>, vector<8x1xf32>
        tpu.vector_store %arg11[%c0_58, %c0_59], %74 {strides = array<i32>} : memref<8x1xf32, #tpu.memory_space<vmem>>, vector<8x1xf32>,
        %cst_60 = arith.constant 0.000000e+00 : f32
        %76 = vector.broadcast %cst_60 : f32 to vector<8x1xf32>
        %c0_61 = arith.constant 0 : index
        %c0_62 = arith.constant 0 : index
        %77 = vector.load %arg12[%c0_61, %c0_62] : memref<8x1xf32, #tpu.memory_space<vmem>>, vector<8x1xf32>
        tpu.vector_store %arg12[%c0_61, %c0_62], %76 {strides = array<i32>} : memref<8x1xf32, #tpu.memory_space<vmem>>, vector<8x1xf32>,
        %cst_63 = arith.constant 0.000000e+00 : f32
        %78 = vector.broadcast %cst_63 : f32 to vector<1x8x256xf32>
        %c0_64 = arith.constant 0 : index
        %c0_65 = arith.constant 0 : index
        %c0_66 = arith.constant 0 : index
        %79 = vector.load %arg7[%c0_64, %c0_65, %c0_66] : memref<1x8x256xf32, #tpu.memory_space<vmem>>, vector<1x8x256xf32>
        tpu.vector_store %arg7[%c0_64, %c0_65, %c0_66], %78 {strides = array<i32>} : memref<1x8x256xf32, #tpu.memory_space<vmem>>, vector<1x8x256xf32>,
      } else {
      }
      %c0 = arith.constant 0 : index
      %c0_4 = arith.constant 0 : index
      %c0_5 = arith.constant 0 : index
      %9 = vector.load %arg2[%c0, %c0_4, %c0_5] : memref<1x4x256xf32, #tpu.memory_space<vmem>>, vector<1x4x256xf32>
      %10 = vector.shape_cast %9 : vector<1x4x256xf32> to vector<4x256xf32>
      %11 = arith.truncf %10 : vector<4x256xf32> to vector<4x256xbf16>
      %c0_6 = arith.constant 0 : index
      %c0_7 = arith.constant 0 : index
      %12 = vector.load %arg8[%c0_6, %c0_7] : memref<4x384xbf16, #tpu.memory_space<vmem>>, vector<4x256xbf16>
      tpu.vector_store %arg8[%c0_6, %c0_7], %11 {strides = array<i32>} : memref<4x384xbf16, #tpu.memory_space<vmem>>, vector<4x256xbf16>,
      %c0_8 = arith.constant 0 : index
      %c0_9 = arith.constant 0 : index
      %13 = vector.load %arg8[%c0_8, %c0_9] : memref<4x384xbf16, #tpu.memory_space<vmem>>, vector<4x256xbf16>
      %c0_10 = arith.constant 0 : index
      %c0_11 = arith.constant 0 : index
      %14 = vector.load %arg9[%c0_10, %c0_11] : memref<36x256xbf16, #tpu.memory_space<vmem>>, vector<4x256xbf16>
      tpu.vector_store %arg9[%c0_10, %c0_11], %13 {strides = array<i32>} : memref<36x256xbf16, #tpu.memory_space<vmem>>, vector<4x256xbf16>,
      %c0_12 = arith.constant 0 : index
      %c1 = arith.constant 1 : index
      %15 = vector.load %arg8[%c0_12, %c1] : memref<4x384xbf16, #tpu.memory_space<vmem>>, vector<4x256xbf16>
      %c4 = arith.constant 4 : index
      %c0_13 = arith.constant 0 : index
      %16 = vector.load %arg9[%c4, %c0_13] : memref<36x256xbf16, #tpu.memory_space<vmem>>, vector<4x256xbf16>
      tpu.vector_store %arg9[%c4, %c0_13], %15 {strides = array<i32>} : memref<36x256xbf16, #tpu.memory_space<vmem>>, vector<4x256xbf16>,
      %c0_14 = arith.constant 0 : index
      %c2 = arith.constant 2 : index
      %17 = vector.load %arg8[%c0_14, %c2] : memref<4x384xbf16, #tpu.memory_space<vmem>>, vector<4x256xbf16>
      %c8 = arith.constant 8 : index
      %c0_15 = arith.constant 0 : index
      %18 = vector.load %arg9[%c8, %c0_15] : memref<36x256xbf16, #tpu.memory_space<vmem>>, vector<4x256xbf16>
      tpu.vector_store %arg9[%c8, %c0_15], %17 {strides = array<i32>} : memref<36x256xbf16, #tpu.memory_space<vmem>>, vector<4x256xbf16>,
      %c0_16 = arith.constant 0 : index
      %c16 = arith.constant 16 : index
      %19 = vector.load %arg8[%c0_16, %c16] : memref<4x384xbf16, #tpu.memory_space<vmem>>, vector<4x256xbf16>
      %c12 = arith.constant 12 : index
      %c0_17 = arith.constant 0 : index
      %20 = vector.load %arg9[%c12, %c0_17] : memref<36x256xbf16, #tpu.memory_space<vmem>>, vector<4x256xbf16>
      tpu.vector_store %arg9[%c12, %c0_17], %19 {strides = array<i32>} : memref<36x256xbf16, #tpu.memory_space<vmem>>, vector<4x256xbf16>,
      %c0_18 = arith.constant 0 : index
      %c17 = arith.constant 17 : index
      %21 = vector.load %arg8[%c0_18, %c17] : memref<4x384xbf16, #tpu.memory_space<vmem>>, vector<4x256xbf16>
      %c16_19 = arith.constant 16 : index
      %c0_20 = arith.constant 0 : index
      %22 = vector.load %arg9[%c16_19, %c0_20] : memref<36x256xbf16, #tpu.memory_space<vmem>>, vector<4x256xbf16>
      tpu.vector_store %arg9[%c16_19, %c0_20], %21 {strides = array<i32>} : memref<36x256xbf16, #tpu.memory_space<vmem>>, vector<4x256xbf16>,
      %c0_21 = arith.constant 0 : index
      %c18 = arith.constant 18 : index
      %23 = vector.load %arg8[%c0_21, %c18] : memref<4x384xbf16, #tpu.memory_space<vmem>>, vector<4x256xbf16>
      %c20 = arith.constant 20 : index
      %c0_22 = arith.constant 0 : index
      %24 = vector.load %arg9[%c20, %c0_22] : memref<36x256xbf16, #tpu.memory_space<vmem>>, vector<4x256xbf16>
      tpu.vector_store %arg9[%c20, %c0_22], %23 {strides = array<i32>} : memref<36x256xbf16, #tpu.memory_space<vmem>>, vector<4x256xbf16>,
      %c0_23 = arith.constant 0 : index
      %c32 = arith.constant 32 : index
      %25 = vector.load %arg8[%c0_23, %c32] : memref<4x384xbf16, #tpu.memory_space<vmem>>, vector<4x256xbf16>
      %c24 = arith.constant 24 : index
      %c0_24 = arith.constant 0 : index
      %26 = vector.load %arg9[%c24, %c0_24] : memref<36x256xbf16, #tpu.memory_space<vmem>>, vector<4x256xbf16>
      tpu.vector_store %arg9[%c24, %c0_24], %25 {strides = array<i32>} : memref<36x256xbf16, #tpu.memory_space<vmem>>, vector<4x256xbf16>,
      %c0_25 = arith.constant 0 : index
      %c33 = arith.constant 33 : index
      %27 = vector.load %arg8[%c0_25, %c33] : memref<4x384xbf16, #tpu.memory_space<vmem>>, vector<4x256xbf16>
      %c28 = arith.constant 28 : index
      %c0_26 = arith.constant 0 : index
      %28 = vector.load %arg9[%c28, %c0_26] : memref<36x256xbf16, #tpu.memory_space<vmem>>, vector<4x256xbf16>
      tpu.vector_store %arg9[%c28, %c0_26], %27 {strides = array<i32>} : memref<36x256xbf16, #tpu.memory_space<vmem>>, vector<4x256xbf16>,
      %c0_27 = arith.constant 0 : index
      %c34 = arith.constant 34 : index
      %29 = vector.load %arg8[%c0_27, %c34] : memref<4x384xbf16, #tpu.memory_space<vmem>>, vector<4x256xbf16>
      %c32_28 = arith.constant 32 : index
      %c0_29 = arith.constant 0 : index
      %30 = vector.load %arg9[%c32_28, %c0_29] : memref<36x256xbf16, #tpu.memory_space<vmem>>, vector<4x256xbf16>
      tpu.vector_store %arg9[%c32_28, %c0_29], %29 {strides = array<i32>} : memref<36x256xbf16, #tpu.memory_space<vmem>>, vector<4x256xbf16>,
      %c0_30 = arith.constant 0 : index
      %c0_31 = arith.constant 0 : index
      %31 = vector.load %arg3[%c0_30, %c0_31] : memref<8x36xbf16, #tpu.memory_space<vmem>>, vector<8x36xbf16>
      %c0_32 = arith.constant 0 : index
      %c0_33 = arith.constant 0 : index
      %32 = vector.load %arg9[%c0_32, %c0_33] : memref<36x256xbf16, #tpu.memory_space<vmem>>, vector<36x256xbf16>
      %cst = arith.constant dense<0.000000e+00> : vector<8x256xf32>
      %33 = tpu.matmul %31, %32, %cst {dimension_numbers = #tpu.dot_dimension_numbers<[1], [0], [0], [1], [0, 0, 1, 1], [], []>} : vector<8x36xbf16>, vector<36x256xbf16>, vector<8x256xf32> -> vector<8x256xf32>
      %34 = arith.truncf %33 : vector<8x256xf32> to vector<8x256xbf16>
      %35 = arith.index_cast %arg1 : i32 to index
      %c0_34 = arith.constant 0 : index
      %c0_35 = arith.constant 0 : index
      %36 = vector.load %arg10[%35, %c0_34, %c0_35] : memref<2x8x256xbf16, #tpu.memory_space<vmem>>, vector<1x8x256xbf16>
      %37 = vector.shape_cast %36 : vector<1x8x256xbf16> to vector<8x256xbf16>
      %38 = vector.shape_cast %34 : vector<8x256xbf16> to vector<1x8x256xbf16>
      tpu.vector_store %arg10[%35, %c0_34, %c0_35], %38 {strides = array<i32>} : memref<2x8x256xbf16, #tpu.memory_space<vmem>>, vector<1x8x256xbf16>,
      %c0_36 = arith.constant 0 : index
      %c0_37 = arith.constant 0 : index
      %39 = vector.load %arg6[%c0_36, %c0_37] : memref<1x256xf32, #tpu.memory_space<vmem>>, vector<1x256xf32>
      %40 = vector.broadcast %39 : vector<1x256xf32> to vector<8x256xf32>
      %41 = arith.mulf %33, %40 : vector<8x256xf32>
      %cst_38 = arith.constant dense<0.000000e+00> : vector<8xf32>
      %42 = vector.multi_reduction <add>, %41, %cst_38 [1] : vector<8x256xf32> to vector<8xf32>
      %43 = vector.shape_cast %42 : vector<8xf32> to vector<8x1xf32>
      %cst_39 = arith.constant 0.00510204071 : f32
      %44 = vector.broadcast %cst_39 : f32 to vector<8x1xf32>
      %45 = arith.mulf %43, %44 : vector<8x1xf32>
      %46 = vector.broadcast %45 : vector<8x1xf32> to vector<8x256xf32>
      %47 = arith.subf %33, %46 : vector<8x256xf32>
      %48 = vector.broadcast %39 : vector<1x256xf32> to vector<8x256xf32>
      %49 = arith.mulf %47, %48 : vector<8x256xf32>
      %50 = arith.mulf %49, %49 : vector<8x256xf32>
      %cst_40 = arith.constant dense<0.000000e+00> : vector<8xf32>
      %51 = vector.multi_reduction <add>, %50, %cst_40 [1] : vector<8x256xf32> to vector<8xf32>
      %52 = vector.shape_cast %51 : vector<8xf32> to vector<8x1xf32>
      %53 = arith.sitofp %arg1 : i32 to f32
      %c0_41 = arith.constant 0 : index
      %c0_42 = arith.constant 0 : index
      %54 = vector.load %arg11[%c0_41, %c0_42] : memref<8x1xf32, #tpu.memory_space<vmem>>, vector<8x1xf32>
      %55 = arith.subf %45, %54 : vector<8x1xf32>
      %c0_43 = arith.constant 0 : index
      %c0_44 = arith.constant 0 : index
      %56 = vector.load %arg11[%c0_43, %c0_44] : memref<8x1xf32, #tpu.memory_space<vmem>>, vector<8x1xf32>
      %cst_45 = arith.constant 1.000000e+00 : f32
      %57 = arith.addf %53, %cst_45 : f32
      %58 = vector.broadcast %57 : f32 to vector<8x1xf32>
      %59 = arith.divf %55, %58 : vector<8x1xf32>
      %60 = arith.addf %56, %59 : vector<8x1xf32>
      %c0_46 = arith.constant 0 : index
      %c0_47 = arith.constant 0 : index
      %61 = vector.load %arg11[%c0_46, %c0_47] : memref<8x1xf32, #tpu.memory_space<vmem>>, vector<8x1xf32>
      tpu.vector_store %arg11[%c0_46, %c0_47], %60 {strides = array<i32>} : memref<8x1xf32, #tpu.memory_space<vmem>>, vector<8x1xf32>,
      %c0_48 = arith.constant 0 : index
      %c0_49 = arith.constant 0 : index
      %62 = vector.load %arg12[%c0_48, %c0_49] : memref<8x1xf32, #tpu.memory_space<vmem>>, vector<8x1xf32>
      %63 = arith.addf %62, %52 : vector<8x1xf32>
      %64 = arith.mulf %55, %55 : vector<8x1xf32>
      %cst_50 = arith.constant 1.960000e+02 : f32
      %65 = arith.mulf %cst_50, %53 : f32
      %cst_51 = arith.constant 1.000000e+00 : f32
      %66 = arith.addf %53, %cst_51 : f32
      %67 = arith.divf %65, %66 : f32
      %68 = vector.broadcast %67 : f32 to vector<8x1xf32>
      %69 = arith.mulf %64, %68 : vector<8x1xf32>
      %70 = arith.addf %63, %69 : vector<8x1xf32>
      %c0_52 = arith.constant 0 : index
      %c0_53 = arith.constant 0 : index
      %71 = vector.load %arg12[%c0_52, %c0_53] : memref<8x1xf32, #tpu.memory_space<vmem>>, vector<8x1xf32>
      tpu.vector_store %arg12[%c0_52, %c0_53], %70 {strides = array<i32>} : memref<8x1xf32, #tpu.memory_space<vmem>>, vector<8x1xf32>,
    } else {
    }
    %c1_i32 = arith.constant 1 : i32
    %3 = arith.cmpi eq, %arg0, %c1_i32 : i32
    %4 = arith.extui %3 : i1 to i32
    %c0_i32_1 = arith.constant 0 : i32
    %5 = arith.cmpi ne, %4, %c0_i32_1 : i32
    scf.if %5 {
      %c0_i32_2 = arith.constant 0 : i32
      %6 = arith.cmpi eq, %arg1, %c0_i32_2 : i32
      %7 = arith.extui %6 : i1 to i32
      %c0_i32_3 = arith.constant 0 : i32
      %8 = arith.cmpi ne, %7, %c0_i32_3 : i32
      scf.if %8 {
        %c0_12 = arith.constant 0 : index
        %c0_13 = arith.constant 0 : index
        %24 = vector.load %arg12[%c0_12, %c0_13] : memref<8x1xf32, #tpu.memory_space<vmem>>, vector<8x1xf32>
        %cst_14 = arith.constant 0.00255102036 : f32
        %25 = vector.broadcast %cst_14 : f32 to vector<8x1xf32>
        %26 = arith.mulf %24, %25 : vector<8x1xf32>
        %cst_15 = arith.constant 9.99999974E-6 : f32
        %27 = vector.broadcast %cst_15 : f32 to vector<8x1xf32>
        %28 = arith.addf %26, %27 : vector<8x1xf32>
        %29 = math.rsqrt %28 : vector<8x1xf32>
        %c0_16 = arith.constant 0 : index
        %c0_17 = arith.constant 0 : index
        %30 = vector.load %arg4[%c0_16, %c0_17] : memref<8x1xf32, #tpu.memory_space<vmem>>, vector<8x1xf32>
        %31 = arith.mulf %30, %29 : vector<8x1xf32>
        %c0_18 = arith.constant 0 : index
        %c0_19 = arith.constant 0 : index
        %32 = vector.load %arg13[%c0_18, %c0_19] : memref<8x1xf32, #tpu.memory_space<vmem>>, vector<8x1xf32>
        tpu.vector_store %arg13[%c0_18, %c0_19], %31 {strides = array<i32>} : memref<8x1xf32, #tpu.memory_space<vmem>>, vector<8x1xf32>,
        %c0_20 = arith.constant 0 : index
        %c0_21 = arith.constant 0 : index
        %33 = vector.load %arg5[%c0_20, %c0_21] : memref<8x1xf32, #tpu.memory_space<vmem>>, vector<8x1xf32>
        %c0_22 = arith.constant 0 : index
        %c0_23 = arith.constant 0 : index
        %34 = vector.load %arg11[%c0_22, %c0_23] : memref<8x1xf32, #tpu.memory_space<vmem>>, vector<8x1xf32>
        %c0_24 = arith.constant 0 : index
        %c0_25 = arith.constant 0 : index
        %35 = vector.load %arg13[%c0_24, %c0_25] : memref<8x1xf32, #tpu.memory_space<vmem>>, vector<8x1xf32>
        %36 = arith.mulf %34, %35 : vector<8x1xf32>
        %37 = arith.subf %33, %36 : vector<8x1xf32>
        %c0_26 = arith.constant 0 : index
        %c0_27 = arith.constant 0 : index
        %38 = vector.load %arg14[%c0_26, %c0_27] : memref<8x1xf32, #tpu.memory_space<vmem>>, vector<8x1xf32>
        tpu.vector_store %arg14[%c0_26, %c0_27], %37 {strides = array<i32>} : memref<8x1xf32, #tpu.memory_space<vmem>>, vector<8x1xf32>,
      } else {
      }
      %9 = arith.index_cast %arg1 : i32 to index
      %c0 = arith.constant 0 : index
      %c0_4 = arith.constant 0 : index
      %10 = vector.load %arg10[%9, %c0, %c0_4] : memref<2x8x256xbf16, #tpu.memory_space<vmem>>, vector<1x8x256xbf16>
      %11 = vector.shape_cast %10 : vector<1x8x256xbf16> to vector<8x256xbf16>
      %12 = arith.extf %11 : vector<8x256xbf16> to vector<8x256xf32>
      %c0_5 = arith.constant 0 : index
      %c0_6 = arith.constant 0 : index
      %13 = vector.load %arg13[%c0_5, %c0_6] : memref<8x1xf32, #tpu.memory_space<vmem>>, vector<8x1xf32>
      %14 = vector.broadcast %13 : vector<8x1xf32> to vector<8x256xf32>
      %15 = arith.mulf %12, %14 : vector<8x256xf32>
      %c0_7 = arith.constant 0 : index
      %c0_8 = arith.constant 0 : index
      %16 = vector.load %arg14[%c0_7, %c0_8] : memref<8x1xf32, #tpu.memory_space<vmem>>, vector<8x1xf32>
      %17 = vector.broadcast %16 : vector<8x1xf32> to vector<8x256xf32>
      %18 = arith.addf %15, %17 : vector<8x256xf32>
      %cst = arith.constant 0.000000e+00 : f32
      %19 = vector.broadcast %cst : f32 to vector<8x256xf32>
      %20 = arith.maximumf %18, %19 : vector<8x256xf32>
      %c0_9 = arith.constant 0 : index
      %c0_10 = arith.constant 0 : index
      %c0_11 = arith.constant 0 : index
      %21 = vector.load %arg7[%c0_9, %c0_10, %c0_11] : memref<1x8x256xf32, #tpu.memory_space<vmem>>, vector<1x8x256xf32>
      %22 = vector.shape_cast %21 : vector<1x8x256xf32> to vector<8x256xf32>
      %23 = vector.shape_cast %20 : vector<8x256xf32> to vector<1x8x256xf32>
      tpu.vector_store %arg7[%c0_9, %c0_10, %c0_11], %23 {strides = array<i32>} : memref<1x8x256xf32, #tpu.memory_space<vmem>>, vector<1x8x256xf32>,
    } else {
    }
    return
  }
  func.func @transform_0(%arg0: i32, %arg1: i32) -> (i32, i32, i32) {
    %c0_i32 = arith.constant 0 : i32
    %0 = arith.cmpi eq, %arg0, %c0_i32 : i32
    %c0_i32_0 = arith.constant 0 : i32
    %1 = arith.select %0, %arg1, %c0_i32_0 : i32
    %c0_i32_1 = arith.constant 0 : i32
    %c0_i32_2 = arith.constant 0 : i32
    %c0_i32_3 = arith.constant 0 : i32
    return %1, %c0_i32_1, %c0_i32_2 : i32, i32, i32
  }
  func.func @transform_1(%arg0: i32, %arg1: i32) -> (i32, i32) {
    %c0_i32 = arith.constant 0 : i32
    %c0_i32_0 = arith.constant 0 : i32
    %c0_i32_1 = arith.constant 0 : i32
    return %c0_i32, %c0_i32_0 : i32, i32
  }
  func.func @transform_2(%arg0: i32, %arg1: i32) -> (i32, i32) {
    %c0_i32 = arith.constant 0 : i32
    %c0_i32_0 = arith.constant 0 : i32
    %c0_i32_1 = arith.constant 0 : i32
    return %c0_i32, %c0_i32_0 : i32, i32
  }
  func.func @transform_3(%arg0: i32, %arg1: i32) -> (i32, i32) {
    %c0_i32 = arith.constant 0 : i32
    %c0_i32_0 = arith.constant 0 : i32
    %c0_i32_1 = arith.constant 0 : i32
    return %c0_i32, %c0_i32_0 : i32, i32
  }
  func.func @transform_4(%arg0: i32, %arg1: i32) -> (i32, i32) {
    %c0_i32 = arith.constant 0 : i32
    %c0_i32_0 = arith.constant 0 : i32
    %c0_i32_1 = arith.constant 0 : i32
    return %c0_i32, %c0_i32_0 : i32, i32
  }
  func.func @transform_5(%arg0: i32, %arg1: i32) -> (i32, i32, i32) {
    %c1_i32 = arith.constant 1 : i32
    %0 = arith.cmpi eq, %arg0, %c1_i32 : i32
    %c0_i32 = arith.constant 0 : i32
    %1 = arith.select %0, %arg1, %c0_i32 : i32
    %c0_i32_0 = arith.constant 0 : i32
    %c0_i32_1 = arith.constant 0 : i32
    %c0_i32_2 = arith.constant 0 : i32
    return %1, %c0_i32_0, %c0_i32_1 : i32, i32, i32
  }
}

</mosaic_0001>

<llo_original>
// kernel: tpu_custom_call.1
$region0: #{tpu_custom_call.1}
  #allocation0 [shape = 'u32[]', space=smem, size = 0x4, offset = 0x4, fixed_abs, tag = 'smem constant byte address 0x4 - core index']
  #allocation1 [shape = 'u32[144,128]{1,0:T(1,128)}', space=vmem, size = 0x12000, scoped, tag = 'internal scratch']
  #allocation2 [shape = 'bf16[4,384]{1,0:T(4,128)(2,1)}', space=vmem, size = 0xc00, scoped, tag = 'scratch operand']
  #allocation3 [shape = 'bf16[36,256]{1,0:T(8,128)(2,1)}', space=vmem, size = 0x5000, scoped, tag = 'scratch operand']
  #allocation4 [shape = 'bf16[2,8,256]{2,1,0:T(8,128)(2,1)}', space=vmem, size = 0x2000, scoped, tag = 'scratch operand']
  #allocation5 [shape = 'f32[8,1]{1,0:T(8,128)}', space=vmem, size = 0x1000, scoped, tag = 'scratch operand']
  #allocation6 [shape = 'f32[8,1]{1,0:T(8,128)}', space=vmem, size = 0x1000, scoped, tag = 'scratch operand']
  #allocation7 [shape = 'f32[8,1]{1,0:T(8,128)}', space=vmem, size = 0x1000, scoped, tag = 'scratch operand']
  #allocation8 [shape = 'f32[8,1]{1,0:T(8,128)}', space=vmem, size = 0x1000, scoped, tag = 'scratch operand']
  %s0 = inlined_call_operand.vmem [shape: f32[2,4,256], index: 0, kind: input, shape index: {}]
  %s1 = inlined_call_operand.hbm [shape: bf16[8,36], index: 1, kind: input, shape index: {}]
  %s2 = inlined_call_operand.vmem [shape: f32[8,1], index: 2, kind: input, shape index: {}]
  %s3 = inlined_call_operand.vmem [shape: f32[8,1], index: 3, kind: input, shape index: {}]
  %s4 = inlined_call_operand.vmem [shape: f32[1,256], index: 4, kind: input, shape index: {}]
  %s5 = inlined_call_operand.hbm [shape: f32[2,8,256], index: 5, kind: output, shape index: {}]
  %s6 = sld [smem:[#allocation0]]
  $region73: #{tpu_custom_call.1} parent=0
    _
  %s8 = ssub.s32 1, %s6
  %s9 = scalar_select 0, %s8, %s6
  $region1: #{tpu_custom_call.1} parent=0
    #allocation9 [shape = 'u8[2048]{0}', space=vmem, size = 0x800, scoped, tag = 'input window, operand 1, single buffered']
    #allocation10 [shape = 's32[2]{0}', space=sflag, size = 0x8, scoped, tag = 'scoped memory for tpu_custom_call.1']
    #allocation11 [shape = 's32[2]{0}', space=sflag, size = 0x8, scoped, tag = 'scoped memory for tpu_custom_call.1']
    #allocation12 [shape = 'u8[16384]{0}', space=vmem, size = 0x4000, scoped, tag = 'output window, operand 0']
    %10 = vsyncpa [#allocation10], 0
    %11 = vsyncpa [#allocation11], 0
    %s12 = scalar_lea.sflag [#allocation11], 1
    %13 = vsyncpa %s12, 0
    loop: start=0, step=1, limit=6
    $region2: #{tpu_custom_call.1} parent=1 // loop_pre_header
      _
    $region3: #{tpu_custom_call.1} parent=1 // loop_header
      %s15 = sphi 0, %s19
      %p16 = scmp.ge.s32.totalorder %s15, 6
      %s22 = sphi 0, %s34
      %s23 = sphi 0, %s30
      %s24 = sphi 0, %s22
      %s25 = sphi 0, %s23
      %s26 = sphi 0, %s24
      %s27 = sphi 0, %s25
      %s41 = sphi 0, %s43
      %s44 = sphi 0, %s41
      %s45 = sphi 0, %s44
      %s61 = sphi 0, %s45
      %s65 = sphi 0, %s65
      %s67 = sphi 0, %s65
      %s68 = sphi 0, %s67
      %s82 = sphi 0, %s68
      %s86 = sphi 0, %s86
      %s88 = sphi 0, %s86
      %s89 = sphi 0, %s88
      %s103 = sphi 0, %s89
      %s107 = sphi 0, %s107
      %s109 = sphi 0, %s107
      %s110 = sphi 0, %s109
      %s124 = sphi 0, %s110
      %s128 = sphi 0, %s128
      %s130 = sphi 0, %s128
      %s131 = sphi 0, %s130
      %s145 = sphi 0, %s131
      %s155 = sphi 0, %s157
      %s158 = sphi 0, %s155
      %s159 = sphi 0, %s158
      %s175 = sphi 0, %s159
    $region4: #{tpu_custom_call.1} parent=1 // loop_header_branch
      %18 = sbr.rel (%p16) target = $region8
    $region5: #{tpu_custom_call.1} parent=1 // loop_body
      %s20 = ssub.s32 %s15, 1
      %s21 = ssub.s32 %s15, 2
      %s28 = sadd.s32 1, %s23
      %p29 = scmp.ge.s32.totalorder %s28, 2
      %s30 = scalar_select %p29, 0, %s28
      %s31 = sadd.s32 1, %s22
      %s32 = scalar_select %p29, %s31, %s22
      %p33 = scmp.ge.s32.totalorder %s32, 2
      %s34 = scalar_select %p33, 0, %s32
      %p35 = scmp.eq.s32.totalorder %s22, 0
      %s36 = scalar_select %p35, %s23, 0
      %p37 = scmp.eq.s32.totalorder %s34, 0
      %s38 = scalar_select %p37, %s30, 0
      %s39 = ssub.s32 %s36, %s38
      %p40 = scmp.eq.s32.totalorder %s39, 0
      %s42 = sadd.s32 %s41, 1
      %s43 = scalar_select %p40, %s41, %s42
      %p46 = pneg %p40
      %p47 = scmp.eq.s32.totalorder %s15, 3
      %p48 = por %p46, %p47
      %p49 = scmp.ne.s32.totalorder %s41, %s44
      %p50 = scmp.eq.s32.totalorder %s15, 0
      %p51 = por %p49, %p50
      %p52 = scmp.ne.s32.totalorder %s41, %s44
      %p53 = scmp.eq.s32.totalorder %s20, 3
      %p54 = por %p52, %p53
      %p55 = scmp.ne.s32.totalorder %s44, %s45
      %p56 = scmp.eq.s32.totalorder %s20, 0
      %p57 = por %p55, %p56
      %p58 = scmp.ne.s32.totalorder %s44, %s45
      %p59 = scmp.eq.s32.totalorder %s21, 3
      %p60 = por %p58, %p59
      %p62 = scmp.ne.s32.totalorder %s45, %s61
      %p63 = scmp.eq.s32.totalorder %s21, 0
      %p64 = por %p62, %p63
      %s66 = sadd.s32 %s65, 1
      %p69 = scmp.eq.s32.totalorder %s15, 3
      %p70 = scmp.ne.s32.totalorder %s65, %s67
      %p71 = scmp.eq.s32.totalorder %s15, 0
      %p72 = por %p70, %p71
      %p73 = scmp.ne.s32.totalorder %s65, %s67
      %p74 = scmp.eq.s32.totalorder %s20, 3
      %p75 = por %p73, %p74
      %p76 = scmp.ne.s32.totalorder %s67, %s68
      %p77 = scmp.eq.s32.totalorder %s20, 0
      %p78 = por %p76, %p77
      %p79 = scmp.ne.s32.totalorder %s67, %s68
      %p80 = scmp.eq.s32.totalorder %s21, 3
      %p81 = por %p79, %p80
      %p83 = scmp.ne.s32.totalorder %s68, %s82
      %p84 = scmp.eq.s32.totalorder %s21, 0
      %p85 = por %p83, %p84
      %s87 = sadd.s32 %s86, 1
      %p90 = scmp.eq.s32.totalorder %s15, 3
      %p91 = scmp.ne.s32.totalorder %s86, %s88
      %p92 = scmp.eq.s32.totalorder %s15, 0
      %p93 = por %p91, %p92
      %p94 = scmp.ne.s32.totalorder %s86, %s88
      %p95 = scmp.eq.s32.totalorder %s20, 3
      %p96 = por %p94, %p95
      %p97 = scmp.ne.s32.totalorder %s88, %s89
      %p98 = scmp.eq.s32.totalorder %s20, 0
      %p99 = por %p97, %p98
      %p100 = scmp.ne.s32.totalorder %s88, %s89
      %p101 = scmp.eq.s32.totalorder %s21, 3
      %p102 = por %p100, %p101
      %p104 = scmp.ne.s32.totalorder %s89, %s103
      %p105 = scmp.eq.s32.totalorder %s21, 0
      %p106 = por %p104, %p105
      %s108 = sadd.s32 %s107, 1
      %p111 = scmp.eq.s32.totalorder %s15, 3
      %p112 = scmp.ne.s32.totalorder %s107, %s109
      %p113 = scmp.eq.s32.totalorder %s15, 0
      %p114 = por %p112, %p113
      %p115 = scmp.ne.s32.totalorder %s107, %s109
      %p116 = scmp.eq.s32.totalorder %s20, 3
      %p117 = por %p115, %p116
      %p118 = scmp.ne.s32.totalorder %s109, %s110
      %p119 = scmp.eq.s32.totalorder %s20, 0
      %p120 = por %p118, %p119
      %p121 = scmp.ne.s32.totalorder %s109, %s110
      %p122 = scmp.eq.s32.totalorder %s21, 3
      %p123 = por %p121, %p122
      %p125 = scmp.ne.s32.totalorder %s110, %s124
      %p126 = scmp.eq.s32.totalorder %s21, 0
      %p127 = por %p125, %p126
      %s129 = sadd.s32 %s128, 1
      %p132 = scmp.eq.s32.totalorder %s15, 3
      %p133 = scmp.ne.s32.totalorder %s128, %s130
      %p134 = scmp.eq.s32.totalorder %s15, 0
      %p135 = por %p133, %p134
      %p136 = scmp.ne.s32.totalorder %s128, %s130
      %p137 = scmp.eq.s32.totalorder %s20, 3
      %p138 = por %p136, %p137
      %p139 = scmp.ne.s32.totalorder %s130, %s131
      %p140 = scmp.eq.s32.totalorder %s20, 0
      %p141 = por %p139, %p140
      %p142 = scmp.ne.s32.totalorder %s130, %s131
      %p143 = scmp.eq.s32.totalorder %s21, 3
      %p144 = por %p142, %p143
      %p146 = scmp.ne.s32.totalorder %s131, %s145
      %p147 = scmp.eq.s32.totalorder %s21, 0
      %p148 = por %p146, %p147
      %p149 = scmp.eq.s32.totalorder %s22, 1
      %s150 = scalar_select %p149, %s23, 0
      %p151 = scmp.eq.s32.totalorder %s34, 1
      %s152 = scalar_select %p151, %s30, 0
      %s153 = ssub.s32 %s150, %s152
      %p154 = scmp.eq.s32.totalorder %s153, 0
      %s156 = sadd.s32 %s155, 1
      %s157 = scalar_select %p154, %s155, %s156
      %p160 = pneg %p154
      %p161 = scmp.eq.s32.totalorder %s15, 3
      %p162 = por %p160, %p161
      %p163 = scmp.ne.s32.totalorder %s155, %s158
      %p164 = scmp.eq.s32.totalorder %s15, 0
      %p165 = por %p163, %p164
      %p166 = scmp.ne.s32.totalorder %s155, %s158
      %p167 = scmp.eq.s32.totalorder %s20, 3
      %p168 = por %p166, %p167
      %p169 = scmp.ne.s32.totalorder %s158, %s159
      %p170 = scmp.eq.s32.totalorder %s20, 0
      %p171 = por %p169, %p170
      %p172 = scmp.ne.s32.totalorder %s158, %s159
      %p173 = scmp.eq.s32.totalorder %s21, 3
      %p174 = por %p172, %p173
      %p176 = scmp.ne.s32.totalorder %s159, %s175
      %p177 = scmp.eq.s32.totalorder %s21, 0
      %p178 = por %p176, %p177
      %p179 = scmp.le.s32.totalorder 1, %s15
      %p180 = scmp.lt.s32.totalorder %s15, 5
      %p181 = pnand %p179, %p180
      %p182 = pneg %p181
      // Predicated region
      $region9: #{tpu_custom_call.1} parent=5 // pred_check
        _
      $region10: #{tpu_custom_call.1} parent=5 // pred_check_branch
        %184 = sbr.rel (%p181) target = $region12
      $region11: #{tpu_custom_call.1} parent=5 // pred_region
        %s185 = ssub.s32 %s15, 1
        // Predicated region
        $region13: #{tpu_custom_call.1} parent=11 // pred_check
          %p186 = pneg %p78
        $region14: #{tpu_custom_call.1} parent=11 // pred_check_branch
          %188 = sbr.rel (%p186) target = $region16
        $region15: #{tpu_custom_call.1} parent=11 // pred_region
          %s190 = ssub.s32 64, 64
          %191 = vsyncadd [#allocation10], %s190
          %s193 = sshll.u32 [#allocation9], 4
          %s194 = int_to_ptr.vmem [resolvable:$true] %s193
          %196 = dma.hbm_to_vmem [thread:$0]  %s1, 64, %s194, [#allocation10]
        $region16: #{tpu_custom_call.1} parent=11 // pred_fallthru
          _
        // Predicated region
        $region17: #{tpu_custom_call.1} parent=11 // pred_check
          %p197 = pneg %p99
        $region18: #{tpu_custom_call.1} parent=11 // pred_check_branch
          %199 = sbr.rel (%p197) target = $region20
        $region19: #{tpu_custom_call.1} parent=11 // pred_region
          _
        $region20: #{tpu_custom_call.1} parent=11 // pred_fallthru
          _
        // Predicated region
        $region21: #{tpu_custom_call.1} parent=11 // pred_check
          %p200 = pneg %p120
        $region22: #{tpu_custom_call.1} parent=11 // pred_check_branch
          %202 = sbr.rel (%p200) target = $region24
        $region23: #{tpu_custom_call.1} parent=11 // pred_region
          _
        $region24: #{tpu_custom_call.1} parent=11 // pred_fallthru
          _
        // Predicated region
        $region25: #{tpu_custom_call.1} parent=11 // pred_check
          %p203 = pneg %p141
        $region26: #{tpu_custom_call.1} parent=11 // pred_check_branch
          %205 = sbr.rel (%p203) target = $region28
        $region27: #{tpu_custom_call.1} parent=11 // pred_region
          _
        $region28: #{tpu_custom_call.1} parent=11 // pred_fallthru
          _
      $region12: #{tpu_custom_call.1} parent=5 // pred_fallthru
        _
      %p206 = scmp.lt.s32.totalorder %s15, 4
      // Predicated region
      $region29: #{tpu_custom_call.1} parent=5 // pred_check
        %p207 = pneg %p206
      $region30: #{tpu_custom_call.1} parent=5 // pred_check_branch
        %209 = sbr.rel (%p207) target = $region32
      $region31: #{tpu_custom_call.1} parent=5 // pred_region
        // Predicated region
        $region33: #{tpu_custom_call.1} parent=31 // pred_check
          %p210 = pneg %p51
        $region34: #{tpu_custom_call.1} parent=31 // pred_check_branch
          %212 = sbr.rel (%p210) target = $region36
        $region35: #{tpu_custom_call.1} parent=31 // pred_region
          %p213 = scmp.eq.s32.totalorder %s22, 0
          %s214 = scalar_select %p213, %s23, 0
          %p215 = scmp.lt.s32.totalorder %s214, 1
          %s216 = scalar_select %p215, %s214, 1
          %s217 = smul.addr %s216, 2
          %s218 = smul.addr %s217, 4
          %s219 = scalar_lea.vmem %s0, %s218
          %p220 = scmp.eq.s32.totalorder %s22, 0
          %s221 = scalar_select %p220, %s23, 0
        $region36: #{tpu_custom_call.1} parent=31 // pred_fallthru
          _
      $region32: #{tpu_custom_call.1} parent=5 // pred_fallthru
        _
      %p222 = scmp.le.s32.totalorder 1, %s15
      %p223 = scmp.lt.s32.totalorder %s15, 5
      %p224 = pnand %p222, %p223
      %p225 = pneg %p224
      // Predicated region
      $region37: #{tpu_custom_call.1} parent=5 // pred_check
        _
      $region38: #{tpu_custom_call.1} parent=5 // pred_check_branch
        %227 = sbr.rel (%p224) target = $region40
      $region39: #{tpu_custom_call.1} parent=5 // pred_region
        %s228 = ssub.s32 %s15, 1
        // Predicated region
        $region41: #{tpu_custom_call.1} parent=39 // pred_check
          %p229 = pneg %p78
        $region42: #{tpu_custom_call.1} parent=39 // pred_check_branch
          %231 = sbr.rel (%p229) target = $region44
        $region43: #{tpu_custom_call.1} parent=39 // pred_region
          %232 = dma.done [#allocation10], 64
        $region44: #{tpu_custom_call.1} parent=39 // pred_fallthru
          _
        %p233 = scmp.eq.s32.totalorder %s24, 0
        %s234 = scalar_select %p233, %s25, 0
        %p235 = scmp.lt.s32.totalorder %s234, 1
        %s236 = scalar_select %p235, %s234, 1
        %s237 = smul.addr %s236, 2
        %s238 = smul.addr %s237, 4
        %s239 = scalar_lea.vmem %s0, %s238
        %p240 = pneg %p57
        %p241 = pneg %p54
        %p242 = pneg %p78
        %p243 = pneg %p75
        %p244 = pneg %p99
        %p245 = pneg %p96
        %p246 = pneg %p120
        %p247 = pneg %p117
        %p248 = pneg %p141
        %p249 = pneg %p138
        %p250 = pneg %p171
        %p251 = pneg %p168
        %s252 = sand.u32 %s158, 1
        %s253 = scalar_lea.sflag [#allocation11], %s252
        %s254 = sand.u32 %s158, 1
        %s255 = smul.addr %s254, 16
        %s256 = scalar_lea.vmem [#allocation12], %s255
        %p257 = scmp.eq.s32.totalorder %s24, 0
        %s258 = scalar_select %p257, %s25, 0
        %p259 = scmp.lt.s32.totalorder %s258, 1
        %s260 = scalar_select %p259, %s258, 1
        %s261 = smul.addr %s260, 2
        %s262 = smul.addr %s261, 4
        %s263 = scalar_lea.vmem %s0, %s262
        %p264 = scmp.eq.s32.totalorder %s24, 0
        %s265 = scalar_select %p264, %s25, 0
        %p266 = scmp.eq.s32.totalorder %s24, 1
        %s267 = scalar_select %p266, %s25, 0
        %p269 = scmp.eq.s32.totalorder %s24, 0
        // Predicated region
        $region45: #{tpu_custom_call.1} parent=39 // pred_check
          %p270 = pneg %p269
        $region46: #{tpu_custom_call.1} parent=39 // pred_check_branch
          %272 = sbr.rel (%p270) target = $region48
        $region47: #{tpu_custom_call.1} parent=39 // pred_region
          %p273 = scmp.eq.s32.totalorder %s25, 0
          // Predicated region
          $region49: #{tpu_custom_call.1} parent=47 // pred_check
            %p274 = pneg %p273
          $region50: #{tpu_custom_call.1} parent=47 // pred_check_branch
            %276 = sbr.rel (%p274) target = $region52
          $region51: #{tpu_custom_call.1} parent=47 // pred_region
            %277 = vst [vmem:[#allocation2] sm:$0x3f] 0
            %vm278 = vcmask 7168
            %279 = vst.msk [vmem:[#allocation5] sm:$0xff] %vm278, 0.0
            %280 = vst.msk [vmem:[#allocation6] sm:$0xff] %vm278, 0.0
            %281 = vst [vmem:[%s256] sm:$0xff] 0.0
            %282 = vst [vmem:[%s256 + $0x8] sm:$0xff] 0.0
          $region52: #{tpu_custom_call.1} parent=47 // pred_fallthru
            _
          %v283 = vld [vmem:[%s263] sm:$0xff]
          %v285 = vcombine.high %v283, %v283
          %v287 = vpack.c.bf16 %v283, %v283
          %v288 = vpack.c.bf16 %v285, %v285
          %v291 = vcombine.low %v287, %v288
          %v293 = vunpack.c.l.s4 1983009808
          %v294 = vunpack.c.0.s8 %v293
          %v295 = vlaneseq
          %v296 = vshrl.u32 %v295, 7
          %v297 = vsub.s32 %v294, %v296
          %v298 = vrot.slane %v291, %v297
          %300 = vst [vmem:[#allocation2] sm:$0xf] %v298
          %v301 = vld [vmem:[#allocation2] sm:$0xf]
          %v304 = vunpack.c.l.s4 1983009808
          %v305 = vunpack.c.0.s8 %v304
          %v306 = vlaneseq
          %v307 = vshrl.u32 %v306, 7
          %v308 = vsub.s32 %v305, %v307
          %v309 = vrot.slane %v301, %v308
          %311 = vst [vmem:[#allocation3] sm:$0x33] %v309
          %v312 = vld [vmem:[#allocation2] sm:$0x3f]
          %v314 = vcombine.low %v312, %v312
          %v316 = vunpack.c.l.s4 1983009808
          %v317 = vunpack.c.0.s8 %v316
          %v318 = vlaneseq
          %v319 = vshrl.u32 %v318, 7
          %v320 = vsub.s32 %v317, %v319
          %v321 = vrot.slane %v314, %v320
          %v323 = vunpack.c.l.s4 1983009808
          %v324 = vunpack.c.0.s8 %v323
          %v325 = vlaneseq
          %v326 = vshrl.u32 %v325, 7
          %v327 = vsub.s32 %v324, %v326
          %v328 = vrot.slane %v312, %v327
          %329 = vrot.lane.b32.xlu0 %v321, 127
          %v330 = vpop.permute.xlu0 %329
          %331 = vrot.lane.b32.xlu0 %v328, 127
          %v332 = vpop.permute.xlu0 %331
          %v333 = vrot.slane %v330, 4
          %v334 = vrot.slane %v332, 4
          %vm335 = vcmask 1043456
          %v336 = vsel %vm335, %v333, %v334
          %vm337 = vcmask 1039360
          %v338 = vsel %vm337, %v330, %v336
          %340 = vst [vmem:[#allocation3] sm:$0xcc] %v338
          %v341 = vld [vmem:[#allocation2] sm:$0x3f]
          %v343 = vcombine.high %v341, %v341
          %v345 = vunpack.c.l.s4 1983009808
          %v346 = vunpack.c.0.s8 %v345
          %v347 = vlaneseq
          %v348 = vshrl.u32 %v347, 7
          %v349 = vsub.s32 %v346, %v348
          %v350 = vrot.slane %v341, %v349
          %v352 = vunpack.c.l.s4 1983009808
          %v353 = vunpack.c.0.s8 %v352
          %v354 = vlaneseq
          %v355 = vshrl.u32 %v354, 7
          %v356 = vsub.s32 %v353, %v355
          %v357 = vrot.slane %v343, %v356
          %358 = vrot.lane.b32.xlu0 %v350, 126
          %v359 = vpop.permute.xlu0 %358
          %360 = vrot.lane.b32.xlu0 %v357, 126
          %v361 = vpop.permute.xlu0 %360
          %v362 = vrot.slane %v359, 4
          %v363 = vrot.slane %v361, 4
          %v364 = vsel %vm335, %v362, %v363
          %vm365 = vcmask 1031168
          %v366 = vsel %vm365, %v359, %v364
          %368 = vst [vmem:[#allocation3 + $0x8] sm:$0x33] %v366
          %v369 = vld [vmem:[#allocation2] sm:$0x3f]
          %v371 = vcombine.low %v369, %v369
          %v373 = vunpack.c.l.s4 1983009808
          %v374 = vunpack.c.0.s8 %v373
          %v375 = vlaneseq
          %v376 = vshrl.u32 %v375, 7
          %v377 = vsub.s32 %v374, %v376
          %v378 = vrot.slane %v371, %v377
          %v380 = vunpack.c.l.s4 1983009808
          %v381 = vunpack.c.0.s8 %v380
          %v382 = vlaneseq
          %v383 = vshrl.u32 %v382, 7
          %v384 = vsub.s32 %v381, %v383
          %v385 = vrot.slane %v369, %v384
          %386 = vrot.lane.b32.xlu0 %v378, 112
          %v387 = vpop.permute.xlu0 %386
          %388 = vrot.lane.b32.xlu0 %v385, 112
          %v389 = vpop.permute.xlu0 %388
          %v390 = vrot.slane %v387, 4
          %v391 = vrot.slane %v389, 4
          %v392 = vsel %vm335, %v390, %v391
          %vm393 = vcmask 916480
          %v394 = vsel %vm393, %v387, %v392
          %396 = vst [vmem:[#allocation3 + $0x8] sm:$0xcc] %v394
          %v397 = vld [vmem:[#allocation2] sm:$0x3f]
          %v399 = vcombine.high %v397, %v397
          %v401 = vunpack.c.l.s4 1983009808
          %v402 = vunpack.c.0.s8 %v401
          %v403 = vlaneseq
          %v404 = vshrl.u32 %v403, 7
          %v405 = vsub.s32 %v402, %v404
          %v406 = vrot.slane %v397, %v405
          %v408 = vunpack.c.l.s4 1983009808
          %v409 = vunpack.c.0.s8 %v408
          %v410 = vlaneseq
          %v411 = vshrl.u32 %v410, 7
          %v412 = vsub.s32 %v409, %v411
          %v413 = vrot.slane %v399, %v412
          %414 = vrot.lane.b32.xlu0 %v406, 111
          %v415 = vpop.permute.xlu0 %414
          %416 = vrot.lane.b32.xlu0 %v413, 111
          %v417 = vpop.permute.xlu0 %416
          %v418 = vrot.slane %v415, 4
          %v419 = vrot.slane %v417, 4
          %v420 = vsel %vm335, %v418, %v419
          %vm421 = vcmask 908288
          %v422 = vsel %vm421, %v415, %v420
          %424 = vst [vmem:[#allocation3 + $0x10] sm:$0x33] %v422
          %v425 = vld [vmem:[#allocation2] sm:$0x3f]
          %v427 = vcombine.low %v425, %v425
          %v429 = vunpack.c.l.s4 1983009808
          %v430 = vunpack.c.0.s8 %v429
          %v431 = vlaneseq
          %v432 = vshrl.u32 %v431, 7
          %v433 = vsub.s32 %v430, %v432
          %v434 = vrot.slane %v427, %v433
          %v436 = vunpack.c.l.s4 1983009808
          %v437 = vunpack.c.0.s8 %v436
          %v438 = vlaneseq
          %v439 = vshrl.u32 %v438, 7
          %v440 = vsub.s32 %v437, %v439
          %v441 = vrot.slane %v425, %v440
          %442 = vrot.lane.b32.xlu0 %v434, 110
          %v443 = vpop.permute.xlu0 %442
          %444 = vrot.lane.b32.xlu0 %v441, 110
          %v445 = vpop.permute.xlu0 %444
          %v446 = vrot.slane %v443, 4
          %v447 = vrot.slane %v445, 4
          %v448 = vsel %vm335, %v446, %v447
          %vm449 = vcmask 900096
          %v450 = vsel %vm449, %v443, %v448
          %452 = vst [vmem:[#allocation3 + $0x10] sm:$0xcc] %v450
          %v453 = vld [vmem:[#allocation2] sm:$0x3f]
          %v455 = vcombine.high %v453, %v453
          %v457 = vunpack.c.l.s4 1983009808
          %v458 = vunpack.c.0.s8 %v457
          %v459 = vlaneseq
          %v460 = vshrl.u32 %v459, 7
          %v461 = vsub.s32 %v458, %v460
          %v462 = vrot.slane %v453, %v461
          %v464 = vunpack.c.l.s4 1983009808
          %v465 = vunpack.c.0.s8 %v464
          %v466 = vlaneseq
          %v467 = vshrl.u32 %v466, 7
          %v468 = vsub.s32 %v465, %v467
          %v469 = vrot.slane %v455, %v468
          %470 = vrot.lane.b32.xlu0 %v462, 96
          %v471 = vpop.permute.xlu0 %470
          %472 = vrot.lane.b32.xlu0 %v469, 96
          %v473 = vpop.permute.xlu0 %472
          %v474 = vrot.slane %v471, 4
          %v475 = vrot.slane %v473, 4
          %v476 = vsel %vm335, %v474, %v475
          %vm477 = vcmask 785408
          %v478 = vsel %vm477, %v471, %v476
          %480 = vst [vmem:[#allocation3 + $0x18] sm:$0x33] %v478
          %v481 = vld [vmem:[#allocation2] sm:$0x3f]
          %v483 = vcombine.low %v481, %v481
          %v485 = vunpack.c.l.s4 1983009808
          %v486 = vunpack.c.0.s8 %v485
          %v487 = vlaneseq
          %v488 = vshrl.u32 %v487, 7
          %v489 = vsub.s32 %v486, %v488
          %v490 = vrot.slane %v483, %v489
          %v492 = vunpack.c.l.s4 1983009808
          %v493 = vunpack.c.0.s8 %v492
          %v494 = vlaneseq
          %v495 = vshrl.u32 %v494, 7
          %v496 = vsub.s32 %v493, %v495
          %v497 = vrot.slane %v481, %v496
          %498 = vrot.lane.b32.xlu0 %v490, 95
          %v499 = vpop.permute.xlu0 %498
          %500 = vrot.lane.b32.xlu0 %v497, 95
          %v501 = vpop.permute.xlu0 %500
          %v502 = vrot.slane %v499, 4
          %v503 = vrot.slane %v501, 4
          %v504 = vsel %vm335, %v502, %v503
          %vm505 = vcmask 777216
          %v506 = vsel %vm505, %v499, %v504
          %508 = vst [vmem:[#allocation3 + $0x18] sm:$0xcc] %v506
          %v509 = vld [vmem:[#allocation2] sm:$0x3f]
          %v511 = vcombine.high %v509, %v509
          %v513 = vunpack.c.l.s4 1983009808
          %v514 = vunpack.c.0.s8 %v513
          %v515 = vlaneseq
          %v516 = vshrl.u32 %v515, 7
          %v517 = vsub.s32 %v514, %v516
          %v518 = vrot.slane %v509, %v517
          %v520 = vunpack.c.l.s4 1983009808
          %v521 = vunpack.c.0.s8 %v520
          %v522 = vlaneseq
          %v523 = vshrl.u32 %v522, 7
          %v524 = vsub.s32 %v521, %v523
          %v525 = vrot.slane %v511, %v524
          %526 = vrot.lane.b32.xlu0 %v518, 94
          %v527 = vpop.permute.xlu0 %526
          %528 = vrot.lane.b32.xlu0 %v525, 94
          %v529 = vpop.permute.xlu0 %528
          %v530 = vrot.slane %v527, 4
          %v531 = vrot.slane %v529, 4
          %v532 = vsel %vm335, %v530, %v531
          %vm533 = vcmask 769024
          %v534 = vsel %vm533, %v527, %v532
          %536 = vst [vmem:[#allocation3 + $0x20] sm:$0x33] %v534
          %v537 = vld [vmem:[#allocation9] sm:$0xf]
          %v538 = vld [vmem:[#allocation3] sm:$0xff]
          %v539 = vld [vmem:[#allocation3 + $0x8] sm:$0xff]
          %v540 = vld [vmem:[#allocation3 + $0x10] sm:$0xff]
          %v541 = vld [vmem:[#allocation3 + $0x18] sm:$0xff]
          %v542 = vld [vmem:[#allocation3 + $0x20] sm:$0x33]
          %v548 = vunpack.c.l.b16 %v538
          %v549 = vunpack.c.h.b16 %v538
          %v550 = vunpack.c.l.b16 %v539
          %v551 = vunpack.c.h.b16 %v539
          %v552 = vunpack.c.l.b16 %v540
          %v553 = vunpack.c.h.b16 %v540
          %v554 = vunpack.c.l.b16 %v541
          %v555 = vunpack.c.h.b16 %v541
          %v556 = vunpack.c.l.b16 %v542
          %v557 = vunpack.c.h.b16 %v542
          %v558 = vpack.c.b16 %v550, %v548
          %v559 = vpack.c.b16 %v551, %v549
          %v560 = vpack.c.b16 %v554, %v552
          %v561 = vpack.c.b16 %v555, %v553
          %v562 = vpack.c.b16 %v556, %v556
          %v563 = vpack.c.b16 %v557, %v557
          %vm568 = vcmask 293888
          %v570 = vsel %vm568, %v537, 0
          %vm572 = vcmask 1041408
          %v574 = vsel %vm572, %v562, 0
          %v577 = vsel %vm572, %v563, 0
          %579 = vmatprep.subr.bf16.mxu0 0
          %580 = vmatpush1.bf16.msra.mxu0 0
          %581 = vmatprep.subr.bf16.mxu0 0
          %582 = vmatpush1.bf16.msra.mxu0 0
          %583 = vmatprep.subr.bf16.mxu0 0
          %584 = vmatpush1.bf16.msra.mxu0 0
          %585 = vmatprep.subr.bf16.mxu0 0
          %586 = vmatpush1.bf16.msra.mxu0 0
          %587 = vmatprep.subr.bf16.mxu0 0
          %588 = vmatpush1.bf16.msra.mxu0 0
          %589 = vmatprep.subr.bf16.mxu0 %v577
          %590 = vmatpush1.bf16.msra.mxu0 %v574
          %591 = vmatprep.subr.bf16.mxu0 %v561
          %592 = vmatpush1.bf16.msra.mxu0 %v560
          %593 = vmatprep.subr.bf16.mxu0 %v559
          %594 = vmatpush1.bf16.msra.mxu0 %v558
          %595 = vmatprep.subr.bf16.mxu0 0
          %596 = vmatpush2.bf16.msra.mxu0 0
          %597 = vmatprep.subr.bf16.mxu0 0
          %598 = vmatpush2.bf16.msra.mxu0 0
          %599 = vmatprep.subr.bf16.mxu0 0
          %600 = vmatpush2.bf16.msra.mxu0 0
          %601 = vmatprep.subr.bf16.mxu0 0
          %602 = vmatpush2.bf16.msra.mxu0 0
          %603 = vmatprep.subr.bf16.mxu0 0
          %604 = vmatpush2.bf16.msra.mxu0 0
          %605 = vmatprep.subr.bf16.mxu0 0
          %606 = vmatpush2.bf16.msra.mxu0 0
          %607 = vmatprep.subr.bf16.mxu0 0
          %608 = vmatpush2.bf16.msra.mxu0 0
          %609 = vmatprep.subr.bf16.mxu0 0
          %610 = vmatpush2.bf16.msra.mxu0 0
          %611 = vmatprep.mubr.bf16.mxu0 0
          %612 = vmatmul.mubr.bf16.gmra.mxu0 %v570
          %v613 = vpop.f32.mrf.mxu0
          %v614 = vadd.f32 0.0, %v613
          %v615 = vpop.f32.mrf.mxu0
          %v616 = vadd.f32 0.0, %v615
          %v617 = vpop.f32.mrf.mxu0
          %v618 = vpop.f32.mrf.mxu0
          %619 = vdwg.mxu0
          %v620 = vpack.c.bf16 %v614, %v614
          %v621 = vpack.c.bf16 %v616, %v616
          %v624 = vunpack.c.l.b16 %v620
          %v625 = vunpack.c.l.b16 %v621
          %v626 = vpack.c.b16 %v625, %v624
          %s628 = smul.u32 %s25, 2
          %s629 = smul.addr %s628, 4
          %s630 = scalar_lea.vmem [#allocation4], %s629
          %631 = vst [vmem:[%s630] sm:$0xff] %v626
          %v632 = vld [vmem:[%s4] sm:$0x3]
          %v634 = vlaneseq
          %v635 = vshrl.u32 %v634, 7
          %v636 = vsub.s32 0, %v635
          %v637 = vrot.slane %v632, %v636
          %v638 = vlaneseq
          %v639 = vshrl.u32 %v638, 7
          %v640 = vsub.s32 1, %v639
          %v641 = vrot.slane %v632, %v640
          %v644 = vmul.f32 %v614, %v637
          %v645 = vmul.f32 %v616, %v641
          %v646 = vadd.f32 %v644, %v645
          %647 = vadd.xlane.f32.xlu0 %v646
          %v648 = vpop.xlane.xlu0 %647
          %v649 = vmul.f32 %v648, 0.0051020407
          %v650 = vsub.f32 %v614, %v649
          %v651 = vsub.f32 %v616, %v649
          %v652 = vmul.f32 %v650, %v637
          %v653 = vmul.f32 %v651, %v641
          %v654 = vmul.f32 %v652, %v652
          %v655 = vmul.f32 %v653, %v653
          %v656 = vadd.f32 %v654, %v655
          %657 = vadd.xlane.f32.xlu0 %v656
          %v658 = vpop.xlane.xlu0 %657
          %s659 = scvt.s32.f32 %s25
          %v660 = vld [vmem:[#allocation5] sm:$0xff]
          %v661 = vsub.f32 %v649, %v660
          %s662 = sadd.f32 %s659, 1.0
          %v663 = vstv %s662
          %v664 = vrcp.pop %v663
          %v665 = vmul.f32 %v661, %v664
          %v666 = vadd.f32 %v660, %v665
          %vm667 = vcmask 7168
          %668 = vst.msk [vmem:[#allocation5] sm:$0xff] %vm667, %v666
          %v669 = vld [vmem:[#allocation6] sm:$0xff]
          %v670 = vadd.f32 %v669, %v658
          %v671 = vmul.f32 %v661, %v661
          %s672 = smul.f32 %s659, 196.0
          %v673 = vstv %s662
          %v674 = vrcp.pop %v673
          %s675 = vtos %v674
          %s676 = smul.f32 %s672, %s675
          %v677 = vstv %s676
          %v678 = vmul.f32 %v671, %v677
          %v679 = vadd.f32 %v670, %v678
          %680 = vst.msk [vmem:[#allocation6] sm:$0xff] %vm667, %v679
        $region48: #{tpu_custom_call.1} parent=39 // pred_fallthru
          _
        %p681 = scmp.eq.s32.totalorder %s24, 1
        // Predicated region
        $region53: #{tpu_custom_call.1} parent=39 // pred_check
          %p682 = pneg %p681
        $region54: #{tpu_custom_call.1} parent=39 // pred_check_branch
          %684 = sbr.rel (%p682) target = $region56
        $region55: #{tpu_custom_call.1} parent=39 // pred_region
          %p685 = scmp.eq.s32.totalorder %s25, 0
          // Predicated region
          $region57: #{tpu_custom_call.1} parent=55 // pred_check
            %p686 = pneg %p685
          $region58: #{tpu_custom_call.1} parent=55 // pred_check_branch
            %688 = sbr.rel (%p686) target = $region60
          $region59: #{tpu_custom_call.1} parent=55 // pred_region
            %v689 = vld [vmem:[#allocation6] sm:$0xff]
            %v690 = vmul.f32 %v689, 0.0025510204
            %v691 = vadd.f32 %v690, 1e-05
            %v692 = vrsqrt.pop %v691
            %v693 = vld [vmem:[%s2] sm:$0xff]
            %v694 = vmul.f32 %v693, %v692
            %vm695 = vcmask 7168
            %696 = vst.msk [vmem:[#allocation7] sm:$0xff] %vm695, %v694
            %v697 = vld [vmem:[%s3] sm:$0xff]
            %v698 = vld [vmem:[#allocation5] sm:$0xff]
            %v699 = vld [vmem:[#allocation7] sm:$0xff]
            %v700 = vmul.f32 %v698, %v699
            %v701 = vsub.f32 %v697, %v700
            %702 = vst.msk [vmem:[#allocation8] sm:$0xff] %vm695, %v701
          $region60: #{tpu_custom_call.1} parent=55 // pred_fallthru
            _
          %s703 = smul.u32 %s25, 2
          %s704 = smul.addr %s703, 4
          %s705 = scalar_lea.vmem [#allocation4], %s704
          %v706 = vld [vmem:[%s705] sm:$0xff]
          %v707 = vunpack.c.l.bf16 %v706
          %v708 = vunpack.c.h.bf16 %v706
          %v709 = vld [vmem:[#allocation7] sm:$0xff]
          %711 = vset.pattern.permute.xlu0 0
          %712 = vperm.xlu0 %711, %v709
          %v713 = vpop.permute.xlu0 %712
          %v715 = vmul.f32 %v707, %v713
          %v716 = vmul.f32 %v708, %v713
          %v717 = vld [vmem:[#allocation8] sm:$0xff]
          %719 = vset.pattern.permute.xlu0 0
          %720 = vperm.xlu0 %719, %v717
          %v721 = vpop.permute.xlu0 %720
          %v723 = vadd.f32 %v715, %v721
          %v724 = vadd.f32 %v716, %v721
          %v725 = vmax.f32 %v723, 0.0
          %v726 = vmax.f32 %v724, 0.0
          %727 = vst [vmem:[%s256] sm:$0xff] %v725
          %728 = vst [vmem:[%s256 + $0x8] sm:$0xff] %v726
        $region56: #{tpu_custom_call.1} parent=39 // pred_fallthru
          _
        %s729 = sand.u32 %s158, 1
        %s730 = scalar_lea.sflag [#allocation11], %s729
        %s731 = sand.u32 %s158, 1
        %s732 = smul.addr %s731, 16
        %s733 = scalar_lea.vmem [#allocation12], %s732
        // Predicated region
        $region61: #{tpu_custom_call.1} parent=39 // pred_check
          %p734 = pneg %p168
        $region62: #{tpu_custom_call.1} parent=39 // pred_check_branch
          %736 = sbr.rel (%p734) target = $region64
        $region63: #{tpu_custom_call.1} parent=39 // pred_region
          %p737 = scmp.eq.s32.totalorder %s24, 1
          %s738 = scalar_select %p737, %s25, 0
          %s740 = ssub.s32 256, 256
          %741 = vsyncadd %s730, %s740
          %s742 = smul.addr %s738, 2
          %s743 = smul.addr %s742, 128
          %s744 = scalar_lea.hbm %s5, %s743
          %s746 = sshll.u32 %s733, 4
          %s747 = int_to_ptr.vmem [resolvable:$true] %s746
          %749 = dma.vmem_to_hbm [thread:$0]  %s747, 256, %s744, %s730
        $region64: #{tpu_custom_call.1} parent=39 // pred_fallthru
          _
      $region40: #{tpu_custom_call.1} parent=5 // pred_fallthru
        _
      %p750 = scmp.le.s32.totalorder 2, %s15
      // Predicated region
      $region65: #{tpu_custom_call.1} parent=5 // pred_check
        %p751 = pneg %p750
      $region66: #{tpu_custom_call.1} parent=5 // pred_check_branch
        %753 = sbr.rel (%p751) target = $region68
      $region67: #{tpu_custom_call.1} parent=5 // pred_region
        %s754 = ssub.s32 %s15, 2
        // Predicated region
        $region69: #{tpu_custom_call.1} parent=67 // pred_check
          %p755 = pneg %p174
        $region70: #{tpu_custom_call.1} parent=67 // pred_check_branch
          %757 = sbr.rel (%p755) target = $region72
        $region71: #{tpu_custom_call.1} parent=67 // pred_region
          %s758 = sand.u32 %s159, 1
          %s759 = scalar_lea.sflag [#allocation11], %s758
          %s760 = sand.u32 %s159, 1
          %s761 = smul.addr %s760, 16
          %s762 = scalar_lea.vmem [#allocation12], %s761
          %763 = dma.done %s759, 256
        $region72: #{tpu_custom_call.1} parent=67 // pred_fallthru
          _
      $region68: #{tpu_custom_call.1} parent=5 // pred_fallthru
        _
    $region6: #{tpu_custom_call.1} parent=1 // loop_footer
      %s19 = sadd.s32 1, %s15
    $region7: #{tpu_custom_call.1} parent=1 // loop_footer_branch
      %14 = sbr.rel target = $region3
    $region8: #{tpu_custom_call.1} parent=1 // loop_exit
      _
    %764 = vsyncpa [#allocation10], 1
    %s765 = scalar_lea.sflag [#allocation10], 1
    %766 = vsyncpa %s765, 1
    %767 = vsyncpa [#allocation11], 1
    %s768 = scalar_lea.sflag [#allocation11], 1
    %769 = vsyncpa %s768, 1

</llo_original>
